<compile_context>
chip_gen: v6e
topology: v6e:2x2x1
jax: 0.10.0
libtpu: 0.0.40
codegen_flags: <defaults>
</compile_context>

<pallas_src>
import jax
import jax.numpy as jnp
from jax.experimental import pallas as pl
from jax.experimental.pallas import tpu as pltpu


def _pos_embed_kernel(x_ref, w_ref, o_ref):
    # x_ref: (tile_b, tile_f), w_ref: (1, tile_f) -> sublane-broadcast add.
    # Cast W_pos in-kernel so differing param/activation dtypes cost nothing.
    o_ref[...] = x_ref[...] + w_ref[...].astype(x_ref.dtype)


_TILE_BUDGET_BYTES = 1 << 20  # ~1 MiB per array per block


def _sublane_unit(itemsize: int) -> int:
    # Packed native sublane count: f32 -> 8, bf16/f16 -> 16, int8/fp8 -> 32.
    return {4: 8, 2: 16, 1: 32}.get(itemsize, 8)


def pos_embed_forward(x: jax.Array, w_pos: jax.Array) -> jax.Array:
    """Pallas TPU implementation of PosEmbed.forward: x + W_pos[:seq_len]."""
    if x.ndim < 2:
        raise ValueError("PosEmbed expects x with shape (..., seq, d_model)")

    orig_shape = x.shape
    S, D = x.shape[-2], x.shape[-1]
    if w_pos.shape[0] < S or w_pos.shape[1] != D:
        raise ValueError("W_pos table is incompatible with x's trailing dims")

    F = S * D

    # Flatten trailing (seq, d_model) into one lane-dense axis; the broadcast
    # add over batch is preserved under this (contiguous, free) reshape.
    x2 = x.reshape(-1, F)
    B = x2.shape[0]

    # Static slice of the table (S is a trace-time int); keep native dtype.
    w2 = w_pos[:S].reshape(1, F)

    itemsize = jnp.dtype(x.dtype).itemsize
    budget_elems = max(128, _TILE_BUDGET_BYTES // itemsize)

    # Lane (flattened) axis tile: full extent if it fits, otherwise a multiple
    # of 128; the ragged last block is masked by the cdiv grid.
    if F <= budget_elems:
        tile_f = F
    else:
        tile_f = max(128, (budget_elems // 128) * 128)

    # Batch (sublane) axis tile: fold batch rows until the block is ~1 MiB.
    # Either the full batch extent (always layout-legal) or a multiple of the
    # dtype's packed sublane count.
    tile_b = max(1, budget_elems // tile_f)
    if tile_b >= B:
        tile_b = B
    else:
        unit = _sublane_unit(itemsize)
        tile_b = min(B, max(unit, (tile_b // unit) * unit))

    grid = (pl.cdiv(F, tile_f), pl.cdiv(B, tile_b))

    out2 = pl.pallas_call(
        _pos_embed_kernel,
        out_shape=jax.ShapeDtypeStruct((B, F), x.dtype),
        grid_spec=pltpu.PrefetchScalarGridSpec(
            num_scalar_prefetch=0,
            grid=grid,
            in_specs=[
                # x: block changes every step (streamed).
                pl.BlockSpec((tile_b, tile_f), lambda f, b: (b, f)),
                # W_pos: index independent of b (innermost axis) -> the block
                # stays VMEM-resident across the whole batch sweep, no re-DMA.
                pl.BlockSpec((1, tile_f), lambda f, b: (0, f)),
            ],
            out_specs=pl.BlockSpec((tile_b, tile_f), lambda f, b: (b, f)),
        ),
        compiler_params=pltpu.CompilerParams(
            dimension_semantics=("parallel", "arbitrary"),
            vmem_limit_bytes=32 * 1024 * 1024,
        ),
    )(x2, w2)

    return out2.reshape(orig_shape)


if __name__ == "__main__":
    key = jax.random.PRNGKey(0)
    k_w, k_x = jax.random.split(key)

    # Shapes implied by the module: (batch, seq, d_model) with seq <= max_ctx.
    batch, seq, d_model, max_ctx = 2, 8, 32, 16

    w_pos = jax.random.normal(k_w, (max_ctx, d_model), dtype=jnp.float32)
    w_pos = w_pos / jnp.sqrt(jnp.float32(d_model))
    x = jax.random.normal(k_x, (batch, seq, d_model), dtype=jnp.float32)

    y = jax.block_until_ready(pos_embed_forward(x, w_pos))

    ref = x + w_pos[:seq]
    assert y.shape == x.shape and y.dtype == x.dtype
    assert bool(jnp.allclose(y, ref, atol=1e-6, rtol=1e-6))
    print("KERNEL_OK")
</pallas_src>

<mosaic_0001>
module attributes {stable_mosaic.version = 11 : i64} {
  func.func @_pos_embed_kernel(%arg0: i32, %arg1: i32, %arg2: memref<2x256xf32, #tpu.memory_space<vmem>>, %arg3: memref<1x256xf32, #tpu.memory_space<vmem>>, %arg4: memref<2x256xf32, #tpu.memory_space<vmem>>) attributes {dimension_semantics = [#tpu.dimension_semantics<parallel>, #tpu.dimension_semantics<arbitrary>], iteration_bounds = array<i64: 1, 1>, scalar_prefetch = 0 : i64, scratch_operands = 0 : i64, tpu.core_type = #tpu.core_type<tc>, window_params = [{transform_indices = @transform_0, window_bounds = array<i64: 2, 256>}, {transform_indices = @transform_1, window_bounds = array<i64: 1, 256>}, {transform_indices = @transform_2, window_bounds = array<i64: 2, 256>}]} {
    %c0 = arith.constant 0 : index
    %c0_0 = arith.constant 0 : index
    %0 = vector.load %arg2[%c0, %c0_0] : memref<2x256xf32, #tpu.memory_space<vmem>>, vector<2x256xf32>
    %c0_1 = arith.constant 0 : index
    %c0_2 = arith.constant 0 : index
    %1 = vector.load %arg3[%c0_1, %c0_2] : memref<1x256xf32, #tpu.memory_space<vmem>>, vector<1x256xf32>
    %2 = vector.broadcast %1 : vector<1x256xf32> to vector<2x256xf32>
    %3 = arith.addf %0, %2 : vector<2x256xf32>
    %c0_3 = arith.constant 0 : index
    %c0_4 = arith.constant 0 : index
    %4 = vector.load %arg4[%c0_3, %c0_4] : memref<2x256xf32, #tpu.memory_space<vmem>>, vector<2x256xf32>
    tpu.vector_store %arg4[%c0_3, %c0_4], %3 {strides = array<i32>} : memref<2x256xf32, #tpu.memory_space<vmem>>, vector<2x256xf32>,
    return
  }
  func.func @transform_0(%arg0: i32, %arg1: i32) -> (i32, i32) {
    %c0_i32 = arith.constant 0 : i32
    return %arg1, %arg0 : i32, i32
  }
  func.func @transform_1(%arg0: i32, %arg1: i32) -> (i32, i32) {
    %c0_i32 = arith.constant 0 : i32
    %c0_i32_0 = arith.constant 0 : i32
    return %c0_i32, %arg0 : i32, i32
  }
  func.func @transform_2(%arg0: i32, %arg1: i32) -> (i32, i32) {
    %c0_i32 = arith.constant 0 : i32
    return %arg1, %arg0 : i32, i32
  }
}

</mosaic_0001>

<llo_original>
// kernel: tpu_custom_call.1
$region0: #{tpu_custom_call.1}
  #allocation0 [shape = 'u32[]', space=smem, size = 0x4, offset = 0x4, fixed_abs, tag = 'smem constant byte address 0x4 - core index']
  #allocation1 [shape = 'u32[144,128]{1,0:T(1,128)}', space=vmem, size = 0x12000, scoped, tag = 'internal scratch']
  %s0 = inlined_call_operand.hbm [shape: f32[2,256], index: 0, kind: input, shape index: {}]
  %s1 = inlined_call_operand.hbm [shape: f32[1,256], index: 1, kind: input, shape index: {}]
  %s2 = inlined_call_operand.hbm [shape: f32[2,256], index: 2, kind: output, shape index: {}]
  %s3 = sld [smem:[#allocation0]]
  $region26: #{tpu_custom_call.1} parent=0
    _
  %s5 = ssub.s32 1, %s3
  %s6 = scalar_select 0, %s5, %s3
  $region1: #{tpu_custom_call.1} parent=0
    #allocation2 [shape = 'u8[2048]{0}', space=vmem, size = 0x800, scoped, tag = 'input window, operand 0, single buffered']
    #allocation3 [shape = 's32[1]{0}', space=sflag, size = 0x4, scoped, tag = 'scoped memory for tpu_custom_call.1']
    #allocation4 [shape = 's32[1]{0}', space=sflag, size = 0x4, scoped, tag = 'scoped memory for tpu_custom_call.1']
    #allocation5 [shape = 'u8[1024]{0}', space=vmem, size = 0x400, scoped, tag = 'input window, operand 1, single buffered']
    #allocation6 [shape = 's32[1]{0}', space=sflag, size = 0x4, scoped, tag = 'scoped memory for tpu_custom_call.1']
    #allocation7 [shape = 'u8[2048]{0}', space=vmem, size = 0x800, scoped, tag = 'output window, operand 0, single buffered']
    %7 = vsyncpa [#allocation3], 0
    %8 = vsyncpa [#allocation6], 0
    %9 = vsyncpa [#allocation4], 0
    // Predicated region
    $region2: #{tpu_custom_call.1} parent=1 // pred_check
      _
    $region3: #{tpu_custom_call.1} parent=1 // pred_check_branch
      %11 = sbr.rel (0) target = $region5
    $region4: #{tpu_custom_call.1} parent=1 // pred_region
      %s13 = ssub.s32 64, 64
      %14 = vsyncadd [#allocation3], %s13
      %s16 = sshll.u32 [#allocation2], 4
      %s17 = int_to_ptr.vmem [resolvable:$true] %s16
      %19 = dma.hbm_to_vmem [thread:$0]  %s0, 64, %s17, [#allocation3]
    $region5: #{tpu_custom_call.1} parent=1 // pred_fallthru
      _
    // Predicated region
    $region6: #{tpu_custom_call.1} parent=1 // pred_check
      _
    $region7: #{tpu_custom_call.1} parent=1 // pred_check_branch
      %21 = sbr.rel (0) target = $region9
    $region8: #{tpu_custom_call.1} parent=1 // pred_region
      %s23 = ssub.s32 32, 32
      %24 = vsyncadd [#allocation6], %s23
      %s26 = sshll.u32 [#allocation5], 4
      %s27 = int_to_ptr.vmem [resolvable:$true] %s26
      %29 = dma.hbm_to_vmem [thread:$0]  %s1, 32, %s27, [#allocation6]
    $region9: #{tpu_custom_call.1} parent=1 // pred_fallthru
      _
    // Predicated region
    $region10: #{tpu_custom_call.1} parent=1 // pred_check
      _
    $region11: #{tpu_custom_call.1} parent=1 // pred_check_branch
      %31 = sbr.rel (0) target = $region13
    $region12: #{tpu_custom_call.1} parent=1 // pred_region
      %32 = dma.done [#allocation3], 64
    $region13: #{tpu_custom_call.1} parent=1 // pred_fallthru
      _
    // Predicated region
    $region14: #{tpu_custom_call.1} parent=1 // pred_check
      _
    $region15: #{tpu_custom_call.1} parent=1 // pred_check_branch
      %34 = sbr.rel (0) target = $region17
    $region16: #{tpu_custom_call.1} parent=1 // pred_region
      %35 = dma.done [#allocation6], 32
    $region17: #{tpu_custom_call.1} parent=1 // pred_fallthru
      _
    %v36 = vld [vmem:[#allocation2] sm:$0xf]
    %v37 = vld [vmem:[#allocation5] sm:$0x3]
    %v39 = vlaneseq
    %v40 = vshrl.u32 %v39, 7
    %v41 = vsub.s32 0, %v40
    %v42 = vrot.slane %v37, %v41
    %v43 = vlaneseq
    %v44 = vshrl.u32 %v43, 7
    %v45 = vsub.s32 1, %v44
    %v46 = vrot.slane %v37, %v45
    %v47 = vcombine.low %v42, %v46
    %v49 = vunpack.c.l.s4 1983009808
    %v50 = vunpack.c.0.s8 %v49
    %v51 = vlaneseq
    %v52 = vshrl.u32 %v51, 7
    %v53 = vsub.s32 %v50, %v52
    %v54 = vrot.slane %v47, %v53
    %v56 = vadd.f32 %v36, %v54
    %57 = vst [vmem:[#allocation7] sm:$0xf] %v56
    // Predicated region
    $region18: #{tpu_custom_call.1} parent=1 // pred_check
      _
    $region19: #{tpu_custom_call.1} parent=1 // pred_check_branch
      %59 = sbr.rel (0) target = $region21
    $region20: #{tpu_custom_call.1} parent=1 // pred_region
      %s61 = ssub.s32 64, 64
      %62 = vsyncadd [#allocation4], %s61
      %s64 = sshll.u32 [#allocation7], 4
      %s65 = int_to_ptr.vmem [resolvable:$true] %s64
      %67 = dma.vmem_to_hbm [thread:$0]  %s65, 64, %s2, [#allocation4]
    $region21: #{tpu_custom_call.1} parent=1 // pred_fallthru
      _
    // Predicated region
    $region22: #{tpu_custom_call.1} parent=1 // pred_check
      _
    $region23: #{tpu_custom_call.1} parent=1 // pred_check_branch
      %69 = sbr.rel (0) target = $region25
    $region24: #{tpu_custom_call.1} parent=1 // pred_region
      %70 = dma.done [#allocation4], 64
    $region25: #{tpu_custom_call.1} parent=1 // pred_fallthru
      _
    %71 = vsyncpa [#allocation3], 1
    %72 = vsyncpa [#allocation6], 1
    %73 = vsyncpa [#allocation4], 1

</llo_original>
